<compile_context>
chip_gen: v7x
topology: tpu7x:2x2x1
jax: 0.10.0
libtpu: 0.0.40
codegen_flags: <defaults>
</compile_context>

<pallas_src>
import functools

import jax
import jax.numpy as jnp
from jax.experimental import pallas as pl
from jax.experimental.pallas import tpu as pltpu


def _round_up(x, m):
    return (x + m - 1) // m * m


def _vmem_capacity_bytes():
    """Per-core VMEM capacity; conservative 64 MiB (v7x) fallback."""
    try:
        info = pltpu.get_tpu_info()
        cap = getattr(info, "vmem_capacity_bytes", None)
        if cap:
            return int(cap)
    except Exception:
        pass
    return 64 * 1024 * 1024


def _pad_cast_2d(a, rows, cols, dtype):
    """Zero-pad a 2-D array to (rows, cols) and cast (no-op when aligned)."""
    if a.shape == (rows, cols):
        return a.astype(dtype)
    out = jnp.zeros((rows, cols), dtype)
    return out.at[: a.shape[0], : a.shape[1]].set(a.astype(dtype))


def _ffn_kernel(x_ref, w1_ref, b1_ref, w2_ref, b2_ref, o_ref, acc_ref):
    """Grid = (row_tiles, hidden_tiles).

    The hidden axis is a reduction over the second matmul; ReLU / bias-1 act
    per hidden unit, so applying them per hidden tile is exact. b1 stays
    resident in VMEM and is sliced with a 128-aligned dynamic offset.
    """
    k = pl.program_id(1)
    tk = w1_ref.shape[1]

    @pl.when(k == 0)
    def _init():
        acc_ref[...] = jnp.zeros_like(acc_ref)

    # hidden tile = relu(x @ W1[:, k-tile] + b1[k-tile]), f32 accumulation.
    h = jnp.dot(x_ref[...], w1_ref[...], preferred_element_type=jnp.float32)
    off = pl.multiple_of(k * tk, 128)
    h = jnp.maximum(h + b1_ref[:, pl.ds(off, tk)], 0.0)

    # Partial contribution of this hidden tile to the output; h is cast back
    # to the compute dtype (bf16) for the MXU, accumulation stays f32.
    acc_ref[...] += jnp.dot(h.astype(w2_ref.dtype), w2_ref[...],
                            preferred_element_type=jnp.float32)

    @pl.when(k == pl.num_programs(1) - 1)
    def _finalize():
        o_ref[...] = (acc_ref[...] + b2_ref[...]).astype(o_ref.dtype)


@functools.partial(jax.jit,
                   static_argnames=("row_tile", "hidden_tile", "compute_dtype"))
def feed_forward_block(x, w1_t, b1, w2_t, b2, *,
                       row_tile=512, hidden_tile=1024,
                       compute_dtype=jnp.bfloat16):
    """x: [..., in_dim]; w1_t: [in_dim, hidden]; w2_t: [hidden, out_dim].

    Weights are the transposes of PyTorch nn.Linear weights ([out, in]) so the
    kernel runs plain row-major matmuls on the MXU.
    """
    in_dim = x.shape[-1]
    hidden = w1_t.shape[1]
    out_dim = w2_t.shape[1]
    lead = x.shape[:-1]

    x2d = x.reshape(-1, in_dim)
    n_rows = x2d.shape[0]

    out_dtype = x.dtype
    cd = jnp.dtype(compute_dtype).itemsize
    od = jnp.dtype(out_dtype).itemsize

    # Lane-dense padded problem dims (static under jit).
    in_p = _round_up(in_dim, 128)
    out_p = _round_up(out_dim, 128)

    # ---- generation-aware VMEM budget -> tile sizes ------------------------
    cap = _vmem_capacity_bytes()
    budget = max(24 * 1024 * 1024,
                 min(cap - 16 * 1024 * 1024, int(cap * 0.8)))

    sub = 8 * max(1, 4 // cd)          # sublane packing of compute dtype (16 for bf16)
    rows_su = _round_up(n_rows, sub)
    if rows_su <= row_tile:
        # All rows fit in one tile: split across >=2 tiles when there is
        # meaningful work so both v7x TensorCores get a share of the rows.
        tm = _round_up((rows_su + 1) // 2, sub) if rows_su > 512 else rows_su
    else:
        tm = row_tile
    tk = min(_round_up(hidden_tile, 128), _round_up(hidden, 128))

    def footprint(tm_, tk_):
        hid_p_ = _round_up(hidden, tk_)
        return (2 * tm_ * in_p * cd           # x tile        (double-buffered)
                + 2 * in_p * tk_ * cd         # W1 tile       (double-buffered)
                + 2 * tk_ * out_p * cd        # W2 tile       (double-buffered)
                + 2 * 8 * hid_p_ * 4          # b1 (resident, sublane-padded)
                + 2 * 8 * out_p * 4           # b2
                + 2 * tm_ * out_p * od        # output tile   (double-buffered)
                + tm_ * out_p * 4)            # f32 accumulator (single copy)

    # Shrink tk first (preserves row reuse / MXU M-width), then tm.
    while footprint(tm, tk) > budget and tk > 128:
        tk = max(128, _round_up(tk // 2, 128))
    while footprint(tm, tk) > budget and tm > 256:
        tm = max(256, _round_up(tm // 2, 256))
    while footprint(tm, tk) > budget and tm > sub:
        tm = max(sub, _round_up(tm // 2, sub))

    hid_p = _round_up(hidden, tk)
    rows_p = _round_up(n_rows, tm)
    grid = (rows_p // tm, hid_p // tk)

    fp_bytes = footprint(tm, tk)
    vmem_limit = int(min(cap, max(budget, int(fp_bytes * 1.15) + (1 << 20))))

    # ---- pad + cast (guarded; zero padding is exact through ReLU) ----------
    # TODO(synk): for static params, hoist this pad/cast out of the per-call
    # path by storing the parameters pre-padded in the compute dtype.
    xp = _pad_cast_2d(x2d, rows_p, in_p, compute_dtype)
    w1p = _pad_cast_2d(w1_t, in_p, hid_p, compute_dtype)
    w2p = _pad_cast_2d(w2_t, hid_p, out_p, compute_dtype)
    b1p = _pad_cast_2d(b1.reshape(1, -1), 1, hid_p, jnp.float32)
    b2p = _pad_cast_2d(b2.reshape(1, -1), 1, out_p, jnp.float32)

    # Advisory cost estimate for XLA's scheduler.
    flops = 2 * rows_p * (in_p * hid_p + hid_p * out_p)
    bytes_accessed = (rows_p * in_p * cd
                      + grid[0] * (in_p * hid_p + hid_p * out_p) * cd
                      + rows_p * out_p * od)
    cost = pl.CostEstimate(flops=flops, transcendentals=0,
                           bytes_accessed=bytes_accessed)

    out2d = pl.pallas_call(
        _ffn_kernel,
        out_shape=jax.ShapeDtypeStruct((rows_p, out_p), out_dtype),
        grid_spec=pltpu.PrefetchScalarGridSpec(
            num_scalar_prefetch=0,
            grid=grid,
            in_specs=[
                pl.BlockSpec((tm, in_p), lambda i, k: (i, 0)),    # x rows
                pl.BlockSpec((in_p, tk), lambda i, k: (0, k)),    # W1 tile
                pl.BlockSpec((1, hid_p), lambda i, k: (0, 0)),    # b1 (resident)
                pl.BlockSpec((tk, out_p), lambda i, k: (k, 0)),   # W2 tile
                pl.BlockSpec((1, out_p), lambda i, k: (0, 0)),    # b2 (resident)
            ],
            out_specs=pl.BlockSpec((tm, out_p), lambda i, k: (i, 0)),
            scratch_shapes=[pltpu.VMEM((tm, out_p), jnp.float32)],
        ),
        compiler_params=pltpu.CompilerParams(
            dimension_semantics=("parallel", "arbitrary"),
            vmem_limit_bytes=vmem_limit,
        ),
        cost_estimate=cost,
    )(xp, w1p, b1p, w2p, b2p)

    if rows_p != n_rows or out_p != out_dim:
        out2d = out2d[:n_rows, :out_dim]
    return out2d.reshape(*lead, out_dim)


def _reference_f32(x, w1_t, b1, w2_t, b2):
    h = jnp.maximum(x @ w1_t + b1, 0.0)
    return h @ w2_t + b2


def _reference_bf16(x, w1_t, b1, w2_t, b2):
    xb = x.astype(jnp.bfloat16)
    w1b = w1_t.astype(jnp.bfloat16)
    w2b = w2_t.astype(jnp.bfloat16)
    h = jnp.dot(xb, w1b, preferred_element_type=jnp.float32) + b1
    h = jnp.maximum(h, 0.0)
    o = jnp.dot(h.astype(jnp.bfloat16), w2b,
                preferred_element_type=jnp.float32) + b2
    return o.astype(x.dtype)


if __name__ == "__main__":
    # Small shapes consistent with the module: x [batch, seq, in_dim],
    # hidden defaults to out_dim unless given; here in=16, hidden=32, out=16.
    batch, seq, in_dim, hidden_dim, out_dim = 2, 8, 16, 32, 16

    key = jax.random.PRNGKey(0)
    kx, kw1, kb1, kw2, kb2 = jax.random.split(key, 5)

    x = jax.random.normal(kx, (batch, seq, in_dim), dtype=jnp.float32)

    # PyTorch Linear weight is [out, in]; stored here as the transpose
    # [in, out] so the kernel does x @ W^T directly.
    w1_t = jax.random.normal(kw1, (in_dim, hidden_dim), dtype=jnp.float32) * 0.1
    b1 = jax.random.normal(kb1, (hidden_dim,), dtype=jnp.float32) * 0.1
    w2_t = jax.random.normal(kw2, (hidden_dim, out_dim), dtype=jnp.float32) * 0.1
    b2 = jax.random.normal(kb2, (out_dim,), dtype=jnp.float32) * 0.1

    out = feed_forward_block(x, w1_t, b1, w2_t, b2)
    out = jax.block_until_ready(out)
    assert out.shape == (batch, seq, out_dim)

    # Tight check against a reference using the same bf16 compute path.
    ref_bf16 = _reference_bf16(x, w1_t, b1, w2_t, b2)
    assert jnp.allclose(out, ref_bf16, atol=1e-4, rtol=1e-4), \
        "mismatch vs bf16-path reference"

    # Loose check against the full-f32 reference (bf16 MXU rounding expected).
    ref_f32 = _reference_f32(x, w1_t, b1, w2_t, b2)
    assert jnp.allclose(out, ref_f32, atol=5e-2, rtol=5e-2), \
        "mismatch vs f32 reference"

    print("KERNEL_OK")
</pallas_src>

<mosaic_0001>
module attributes {stable_mosaic.version = 11 : i64} {
  func.func @_ffn_kernel(%arg0: i32, %arg1: i32, %arg2: memref<16x128xbf16, #tpu.memory_space<vmem>>, %arg3: memref<128x128xbf16, #tpu.memory_space<vmem>>, %arg4: memref<1x128xf32, #tpu.memory_space<vmem>>, %arg5: memref<128x128xbf16, #tpu.memory_space<vmem>>, %arg6: memref<1x128xf32, #tpu.memory_space<vmem>>, %arg7: memref<16x128xf32, #tpu.memory_space<vmem>>, %arg8: memref<16x128xf32, #tpu.memory_space<vmem>>) attributes {dimension_semantics = [#tpu.dimension_semantics<parallel>, #tpu.dimension_semantics<arbitrary>], iteration_bounds = array<i64: 1, 1>, scalar_prefetch = 0 : i64, scratch_operands = 1 : i64, tpu.core_type = #tpu.core_type<tc>, window_params = [{transform_indices = @transform_0, window_bounds = array<i64: 16, 128>}, {transform_indices = @transform_1, window_bounds = array<i64: 128, 128>}, {pipeline_mode = #tpu.pipeline_mode<synchronous>, transform_indices = @transform_2, window_bounds = array<i64: 1, 128>}, {transform_indices = @transform_3, window_bounds = array<i64: 128, 128>}, {pipeline_mode = #tpu.pipeline_mode<synchronous>, transform_indices = @transform_4, window_bounds = array<i64: 1, 128>}, {transform_indices = @transform_5, window_bounds = array<i64: 16, 128>}]} {
    %c0_i32 = arith.constant 0 : i32
    %0 = arith.cmpi eq, %arg1, %c0_i32 : i32
    %1 = arith.extui %0 : i1 to i32
    %c0_i32_0 = arith.constant 0 : i32
    %2 = arith.cmpi ne, %1, %c0_i32_0 : i32
    scf.if %2 {
      %cst_15 = arith.constant 0.000000e+00 : f32
      %23 = vector.broadcast %cst_15 : f32 to vector<16x128xf32>
      %c0_16 = arith.constant 0 : index
      %c0_17 = arith.constant 0 : index
      %24 = vector.load %arg8[%c0_16, %c0_17] : memref<16x128xf32, #tpu.memory_space<vmem>>, vector<16x128xf32>
      tpu.vector_store %arg8[%c0_16, %c0_17], %23 {strides = array<i32>} : memref<16x128xf32, #tpu.memory_space<vmem>>, vector<16x128xf32>,
    } else {
    }
    %c0 = arith.constant 0 : index
    %c0_1 = arith.constant 0 : index
    %3 = vector.load %arg2[%c0, %c0_1] : memref<16x128xbf16, #tpu.memory_space<vmem>>, vector<16x128xbf16>
    %c0_2 = arith.constant 0 : index
    %c0_3 = arith.constant 0 : index
    %4 = vector.load %arg3[%c0_2, %c0_3] : memref<128x128xbf16, #tpu.memory_space<vmem>>, vector<128x128xbf16>
    %cst = arith.constant dense<0.000000e+00> : vector<16x128xf32>
    %5 = tpu.matmul %3, %4, %cst {dimension_numbers = #tpu.dot_dimension_numbers<[1], [0], [0], [1], [0, 0, 1, 1], [], []>} : vector<16x128xbf16>, vector<128x128xbf16>, vector<16x128xf32> -> vector<16x128xf32>
    %c128_i32 = arith.constant 128 : i32
    %6 = arith.muli %arg1, %c128_i32 : i32
    %7 = tpu.assume_multiple %6, 128 : i32
    %c0_4 = arith.constant 0 : index
    %8 = arith.index_cast %7 : i32 to index
    %9 = vector.load %arg4[%c0_4, %8] : memref<1x128xf32, #tpu.memory_space<vmem>>, vector<1x128xf32>
    %10 = vector.broadcast %9 : vector<1x128xf32> to vector<16x128xf32>
    %11 = arith.addf %5, %10 : vector<16x128xf32>
    %cst_5 = arith.constant 0.000000e+00 : f32
    %12 = vector.broadcast %cst_5 : f32 to vector<16x128xf32>
    %13 = arith.maximumf %11, %12 : vector<16x128xf32>
    %c0_6 = arith.constant 0 : index
    %c0_7 = arith.constant 0 : index
    %14 = vector.load %arg8[%c0_6, %c0_7] : memref<16x128xf32, #tpu.memory_space<vmem>>, vector<16x128xf32>
    %15 = arith.truncf %13 : vector<16x128xf32> to vector<16x128xbf16>
    %c0_8 = arith.constant 0 : index
    %c0_9 = arith.constant 0 : index
    %16 = vector.load %arg5[%c0_8, %c0_9] : memref<128x128xbf16, #tpu.memory_space<vmem>>, vector<128x128xbf16>
    %cst_10 = arith.constant dense<0.000000e+00> : vector<16x128xf32>
    %17 = tpu.matmul %15, %16, %cst_10 {dimension_numbers = #tpu.dot_dimension_numbers<[1], [0], [0], [1], [0, 0, 1, 1], [], []>} : vector<16x128xbf16>, vector<128x128xbf16>, vector<16x128xf32> -> vector<16x128xf32>
    %18 = arith.addf %14, %17 : vector<16x128xf32>
    %c0_11 = arith.constant 0 : index
    %c0_12 = arith.constant 0 : index
    %19 = vector.load %arg8[%c0_11, %c0_12] : memref<16x128xf32, #tpu.memory_space<vmem>>, vector<16x128xf32>
    tpu.vector_store %arg8[%c0_11, %c0_12], %18 {strides = array<i32>} : memref<16x128xf32, #tpu.memory_space<vmem>>, vector<16x128xf32>,
    %c0_i32_13 = arith.constant 0 : i32
    %20 = arith.cmpi eq, %arg1, %c0_i32_13 : i32
    %21 = arith.extui %20 : i1 to i32
    %c0_i32_14 = arith.constant 0 : i32
    %22 = arith.cmpi ne, %21, %c0_i32_14 : i32
    scf.if %22 {
      %c0_15 = arith.constant 0 : index
      %c0_16 = arith.constant 0 : index
      %23 = vector.load %arg8[%c0_15, %c0_16] : memref<16x128xf32, #tpu.memory_space<vmem>>, vector<16x128xf32>
      %c0_17 = arith.constant 0 : index
      %c0_18 = arith.constant 0 : index
      %24 = vector.load %arg6[%c0_17, %c0_18] : memref<1x128xf32, #tpu.memory_space<vmem>>, vector<1x128xf32>
      %25 = vector.broadcast %24 : vector<1x128xf32> to vector<16x128xf32>
      %26 = arith.addf %23, %25 : vector<16x128xf32>
      %c0_19 = arith.constant 0 : index
      %c0_20 = arith.constant 0 : index
      %27 = vector.load %arg7[%c0_19, %c0_20] : memref<16x128xf32, #tpu.memory_space<vmem>>, vector<16x128xf32>
      tpu.vector_store %arg7[%c0_19, %c0_20], %26 {strides = array<i32>} : memref<16x128xf32, #tpu.memory_space<vmem>>, vector<16x128xf32>,
    } else {
    }
    return
  }
  func.func @transform_0(%arg0: i32, %arg1: i32) -> (i32, i32) {
    %c0_i32 = arith.constant 0 : i32
    %c0_i32_0 = arith.constant 0 : i32
    return %arg0, %c0_i32 : i32, i32
  }
  func.func @transform_1(%arg0: i32, %arg1: i32) -> (i32, i32) {
    %c0_i32 = arith.constant 0 : i32
    %c0_i32_0 = arith.constant 0 : i32
    return %c0_i32, %arg1 : i32, i32
  }
  func.func @transform_2(%arg0: i32, %arg1: i32) -> (i32, i32) {
    %c0_i32 = arith.constant 0 : i32
    %c0_i32_0 = arith.constant 0 : i32
    %c0_i32_1 = arith.constant 0 : i32
    return %c0_i32, %c0_i32_0 : i32, i32
  }
  func.func @transform_3(%arg0: i32, %arg1: i32) -> (i32, i32) {
    %c0_i32 = arith.constant 0 : i32
    %c0_i32_0 = arith.constant 0 : i32
    return %arg1, %c0_i32 : i32, i32
  }
  func.func @transform_4(%arg0: i32, %arg1: i32) -> (i32, i32) {
    %c0_i32 = arith.constant 0 : i32
    %c0_i32_0 = arith.constant 0 : i32
    %c0_i32_1 = arith.constant 0 : i32
    return %c0_i32, %c0_i32_0 : i32, i32
  }
  func.func @transform_5(%arg0: i32, %arg1: i32) -> (i32, i32) {
    %c0_i32 = arith.constant 0 : i32
    %c0_i32_0 = arith.constant 0 : i32
    return %arg0, %c0_i32 : i32, i32
  }
}

</mosaic_0001>

<llo_original>
// kernel: feed_forward_block.1
$region0: #{feed_forward_block.1}
  #allocation0 [shape = 'u32[]', space=smem, size = 0x4, offset = 0x4, fixed_abs, tag = 'smem constant byte address 0x4 - core index']
  #allocation1 [shape = 'u32[144,128]{1,0:T(1,128)}', space=vmem, size = 0x12000, scoped, tag = 'internal scratch']
  #allocation2 [shape = 'f32[16,128]{1,0:T(8,128)}', space=vmem, size = 0x2000, scoped, tag = 'scratch operand']
  %s0 = inlined_call_operand.vmem [shape: bf16[16,128], index: 0, kind: input, shape index: {}]
  %s1 = inlined_call_operand.vmem [shape: bf16[128,128], index: 1, kind: input, shape index: {}]
  %s2 = inlined_call_operand.vmem [shape: f32[1,128], index: 2, kind: input, shape index: {}]
  %s3 = inlined_call_operand.vmem [shape: bf16[128,128], index: 3, kind: input, shape index: {}]
  %s4 = inlined_call_operand.vmem [shape: f32[1,128], index: 4, kind: input, shape index: {}]
  %s5 = inlined_call_operand.vmem [shape: f32[16,128], index: 5, kind: output, shape index: {}]
  %s6 = sld [smem:[#allocation0]]
  $region38: #{feed_forward_block.1} parent=0
    _
  %s8 = ssub.s32 1, %s6
  %s9 = scalar_select 0, %s8, %s6
  // Predicated region
  $region2: #{feed_forward_block.1} parent=0 // pred_check
    _
  $region3: #{feed_forward_block.1} parent=0 // pred_check_branch
    %11 = sbr.rel (0) target = $region5
  $region4: #{feed_forward_block.1} parent=0 // pred_region
    _
  $region5: #{feed_forward_block.1} parent=0 // pred_fallthru
    _
  // Predicated region
  $region6: #{feed_forward_block.1} parent=0 // pred_check
    _
  $region7: #{feed_forward_block.1} parent=0 // pred_check_branch
    %13 = sbr.rel (0) target = $region9
  $region8: #{feed_forward_block.1} parent=0 // pred_region
    _
  $region9: #{feed_forward_block.1} parent=0 // pred_fallthru
    _
  // Predicated region
  $region10: #{feed_forward_block.1} parent=0 // pred_check
    _
  $region11: #{feed_forward_block.1} parent=0 // pred_check_branch
    %15 = sbr.rel (0) target = $region13
  $region12: #{feed_forward_block.1} parent=0 // pred_region
    _
  $region13: #{feed_forward_block.1} parent=0 // pred_fallthru
    _
  // Predicated region
  $region14: #{feed_forward_block.1} parent=0 // pred_check
    _
  $region15: #{feed_forward_block.1} parent=0 // pred_check_branch
    %17 = sbr.rel (0) target = $region17
  $region16: #{feed_forward_block.1} parent=0 // pred_region
    _
  $region17: #{feed_forward_block.1} parent=0 // pred_fallthru
    _
  // Predicated region
  $region18: #{feed_forward_block.1} parent=0 // pred_check
    _
  $region19: #{feed_forward_block.1} parent=0 // pred_check_branch
    %19 = sbr.rel (0) target = $region21
  $region20: #{feed_forward_block.1} parent=0 // pred_region
    _
  $region21: #{feed_forward_block.1} parent=0 // pred_fallthru
    _
  %p21 = scmp.eq.s32.totalorder 0, 0
  // Predicated region
  $region22: #{feed_forward_block.1} parent=0 // pred_check
    %p22 = pneg %p21
  $region23: #{feed_forward_block.1} parent=0 // pred_check_branch
    %24 = sbr.rel (%p22) target = $region25
  $region24: #{feed_forward_block.1} parent=0 // pred_region
    %25 = vst [vmem:[#allocation2] sm:$0xff] 0.0
    %26 = vst [vmem:[#allocation2 + $0x8] sm:$0xff] 0.0
  $region25: #{feed_forward_block.1} parent=0 // pred_fallthru
    _
  %v27 = vld [vmem:[%s0] sm:$0xf]
  %v28 = vld [vmem:[%s0 + $0x4] sm:$0xf]
  %v29 = vld [vmem:[%s1] sm:$0xf]
  %v30 = vld [vmem:[%s1 + $0x4] sm:$0xf]
  %v31 = vld [vmem:[%s1 + $0x8] sm:$0xf]
  %v32 = vld [vmem:[%s1 + $0xc] sm:$0xf]
  %v33 = vld [vmem:[%s1 + $0x10] sm:$0xf]
  %v34 = vld [vmem:[%s1 + $0x14] sm:$0xf]
  %v35 = vld [vmem:[%s1 + $0x18] sm:$0xf]
  %v36 = vld [vmem:[%s1 + $0x1c] sm:$0xf]
  %v37 = vld [vmem:[%s1 + $0x20] sm:$0xf]
  %v38 = vld [vmem:[%s1 + $0x24] sm:$0xf]
  %v39 = vld [vmem:[%s1 + $0x28] sm:$0xf]
  %v40 = vld [vmem:[%s1 + $0x2c] sm:$0xf]
  %v41 = vld [vmem:[%s1 + $0x30] sm:$0xf]
  %v42 = vld [vmem:[%s1 + $0x34] sm:$0xf]
  %v43 = vld [vmem:[%s1 + $0x38] sm:$0xf]
  %v44 = vld [vmem:[%s1 + $0x3c] sm:$0xf]
  %s45 = smul.u32 0, 128
  %s46 = sshra.s32 %s45, 7
  %s47 = sand.u32 %s45, 127
  %s48 = scalar_lea.vmem %s2, %s46
  %v49 = vld [vmem:[%s48] sm:$0x1]
  %v51 = vlaneseq
  %v52 = vshrl.u32 %v51, 7
  %v53 = vsub.s32 0, %v52
  %v54 = vrot.slane %v49, %v53
  %v58 = vunpack.c.l.b16 %v27
  %v59 = vunpack.c.l.b16 %v28
  %v60 = vpack.c.b16 %v59, %v58
  %v78 = vunpack.c.l.b16 %v29
  %v79 = vunpack.c.l.b16 %v30
  %v80 = vunpack.c.l.b16 %v31
  %v81 = vunpack.c.l.b16 %v32
  %v82 = vunpack.c.l.b16 %v33
  %v83 = vunpack.c.l.b16 %v34
  %v84 = vunpack.c.l.b16 %v35
  %v85 = vunpack.c.l.b16 %v36
  %v86 = vunpack.c.l.b16 %v37
  %v87 = vunpack.c.l.b16 %v38
  %v88 = vunpack.c.l.b16 %v39
  %v89 = vunpack.c.l.b16 %v40
  %v90 = vunpack.c.l.b16 %v41
  %v91 = vunpack.c.l.b16 %v42
  %v92 = vunpack.c.l.b16 %v43
  %v93 = vunpack.c.l.b16 %v44
  %v94 = vpack.c.b16 %v79, %v78
  %v95 = vpack.c.b16 %v81, %v80
  %v96 = vpack.c.b16 %v83, %v82
  %v97 = vpack.c.b16 %v85, %v84
  %v98 = vpack.c.b16 %v87, %v86
  %v99 = vpack.c.b16 %v89, %v88
  %v100 = vpack.c.b16 %v91, %v90
  %v101 = vpack.c.b16 %v93, %v92
  %110 = vmatprep.subr.bf16.mxu0 0
  %111 = vmatpush1.bf16.msra.mxu0 %v94
  %112 = vmatprep.subr.bf16.mxu0 0
  %113 = vmatpush1.bf16.msra.mxu0 %v95
  %114 = vmatprep.subr.bf16.mxu0 0
  %115 = vmatpush1.bf16.msra.mxu0 %v96
  %116 = vmatprep.subr.bf16.mxu0 0
  %117 = vmatpush1.bf16.msra.mxu0 %v97
  %118 = vmatprep.subr.bf16.mxu0 0
  %119 = vmatpush1.bf16.msra.mxu0 %v98
  %120 = vmatprep.subr.bf16.mxu0 0
  %121 = vmatpush1.bf16.msra.mxu0 %v99
  %122 = vmatprep.subr.bf16.mxu0 0
  %123 = vmatpush1.bf16.msra.mxu0 %v100
  %124 = vmatprep.subr.bf16.mxu0 0
  %125 = vmatpush1.bf16.msra.mxu0 %v101
  %126 = vmatprep.subr.bf16.mxu0 0
  %127 = vmatpush1.bf16.msra.mxu0 0
  %128 = vmatprep.subr.bf16.mxu0 0
  %129 = vmatpush1.bf16.msra.mxu0 0
  %130 = vmatprep.subr.bf16.mxu0 0
  %131 = vmatpush1.bf16.msra.mxu0 0
  %132 = vmatprep.subr.bf16.mxu0 0
  %133 = vmatpush1.bf16.msra.mxu0 0
  %134 = vmatprep.subr.bf16.mxu0 0
  %135 = vmatpush1.bf16.msra.mxu0 0
  %136 = vmatprep.subr.bf16.mxu0 0
  %137 = vmatpush1.bf16.msra.mxu0 0
  %138 = vmatprep.subr.bf16.mxu0 0
  %139 = vmatpush1.bf16.msra.mxu0 0
  %140 = vmatprep.subr.bf16.mxu0 0
  %141 = vmatpush1.bf16.msra.mxu0 0
  %142 = vmatprep.mubr.bf16.mxu0 0
  %143 = vmatmul.mubr.bf16.gmra.mrb[0].mxu0 %v60
  %v144 = vpop.f32.mrb[0].mxu0
  %v145 = vadd.f32 %v54, %v144
  %v146 = vpop.f32.mrb[0].mxu0
  %v147 = vpop.f32.mrb[0].mxu0
  %v148 = vadd.f32 %v54, %v147
  %v149 = vpop.f32.mrb[0].mxu0
  %150 = vdwg.mxu0
  %v151 = vmax.f32 %v145, 0.0
  %v152 = vmax.f32 %v148, 0.0
  %v153 = vld [vmem:[#allocation2] sm:$0xff]
  %v154 = vld [vmem:[#allocation2 + $0x8] sm:$0xff]
  %v155 = vpack.c.bf16 %v152, %v151
  %v156 = vld [vmem:[%s3] sm:$0xf]
  %v157 = vld [vmem:[%s3 + $0x4] sm:$0xf]
  %v158 = vld [vmem:[%s3 + $0x8] sm:$0xf]
  %v159 = vld [vmem:[%s3 + $0xc] sm:$0xf]
  %v160 = vld [vmem:[%s3 + $0x10] sm:$0xf]
  %v161 = vld [vmem:[%s3 + $0x14] sm:$0xf]
  %v162 = vld [vmem:[%s3 + $0x18] sm:$0xf]
  %v163 = vld [vmem:[%s3 + $0x1c] sm:$0xf]
  %v164 = vld [vmem:[%s3 + $0x20] sm:$0xf]
  %v165 = vld [vmem:[%s3 + $0x24] sm:$0xf]
  %v166 = vld [vmem:[%s3 + $0x28] sm:$0xf]
  %v167 = vld [vmem:[%s3 + $0x2c] sm:$0xf]
  %v168 = vld [vmem:[%s3 + $0x30] sm:$0xf]
  %v169 = vld [vmem:[%s3 + $0x34] sm:$0xf]
  %v170 = vld [vmem:[%s3 + $0x38] sm:$0xf]
  %v171 = vld [vmem:[%s3 + $0x3c] sm:$0xf]
  %v188 = vunpack.c.l.b16 %v156
  %v189 = vunpack.c.l.b16 %v157
  %v190 = vunpack.c.l.b16 %v158
  %v191 = vunpack.c.l.b16 %v159
  %v192 = vunpack.c.l.b16 %v160
  %v193 = vunpack.c.l.b16 %v161
  %v194 = vunpack.c.l.b16 %v162
  %v195 = vunpack.c.l.b16 %v163
  %v196 = vunpack.c.l.b16 %v164
  %v197 = vunpack.c.l.b16 %v165
  %v198 = vunpack.c.l.b16 %v166
  %v199 = vunpack.c.l.b16 %v167
  %v200 = vunpack.c.l.b16 %v168
  %v201 = vunpack.c.l.b16 %v169
  %v202 = vunpack.c.l.b16 %v170
  %v203 = vunpack.c.l.b16 %v171
  %v204 = vpack.c.b16 %v189, %v188
  %v205 = vpack.c.b16 %v191, %v190
  %v206 = vpack.c.b16 %v193, %v192
  %v207 = vpack.c.b16 %v195, %v194
  %v208 = vpack.c.b16 %v197, %v196
  %v209 = vpack.c.b16 %v199, %v198
  %v210 = vpack.c.b16 %v201, %v200
  %v211 = vpack.c.b16 %v203, %v202
  %220 = vmatprep.subr.bf16.mxu0 0
  %221 = vmatpush1.bf16.msra.mxu0 %v204
  %222 = vmatprep.subr.bf16.mxu0 0
  %223 = vmatpush1.bf16.msra.mxu0 %v205
  %224 = vmatprep.subr.bf16.mxu0 0
  %225 = vmatpush1.bf16.msra.mxu0 %v206
  %226 = vmatprep.subr.bf16.mxu0 0
  %227 = vmatpush1.bf16.msra.mxu0 %v207
  %228 = vmatprep.subr.bf16.mxu0 0
  %229 = vmatpush1.bf16.msra.mxu0 %v208
  %230 = vmatprep.subr.bf16.mxu0 0
  %231 = vmatpush1.bf16.msra.mxu0 %v209
  %232 = vmatprep.subr.bf16.mxu0 0
  %233 = vmatpush1.bf16.msra.mxu0 %v210
  %234 = vmatprep.subr.bf16.mxu0 0
  %235 = vmatpush1.bf16.msra.mxu0 %v211
  %236 = vmatprep.subr.bf16.mxu0 0
  %237 = vmatpush1.bf16.msra.mxu0 0
  %238 = vmatprep.subr.bf16.mxu0 0
  %239 = vmatpush1.bf16.msra.mxu0 0
  %240 = vmatprep.subr.bf16.mxu0 0
  %241 = vmatpush1.bf16.msra.mxu0 0
  %242 = vmatprep.subr.bf16.mxu0 0
  %243 = vmatpush1.bf16.msra.mxu0 0
  %244 = vmatprep.subr.bf16.mxu0 0
  %245 = vmatpush1.bf16.msra.mxu0 0
  %246 = vmatprep.subr.bf16.mxu0 0
  %247 = vmatpush1.bf16.msra.mxu0 0
  %248 = vmatprep.subr.bf16.mxu0 0
  %249 = vmatpush1.bf16.msra.mxu0 0
  %250 = vmatprep.subr.bf16.mxu0 0
  %251 = vmatpush1.bf16.msra.mxu0 0
  %252 = vmatprep.mubr.bf16.mxu0 0
  %253 = vmatmul.mubr.bf16.gmra.mrb[0].mxu0 %v155
  %v254 = vpop.f32.mrb[0].mxu0
  %v255 = vadd.f32 0.0, %v254
  %v256 = vpop.f32.mrb[0].mxu0
  %v257 = vpop.f32.mrb[0].mxu0
  %v258 = vadd.f32 0.0, %v257
  %v259 = vpop.f32.mrb[0].mxu0
  %260 = vdwg.mxu0
  %v261 = vadd.f32 %v153, %v255
  %v262 = vadd.f32 %v154, %v258
  %263 = vst [vmem:[#allocation2] sm:$0xff] %v261
  %264 = vst [vmem:[#allocation2 + $0x8] sm:$0xff] %v262
  // Predicated region
  $region26: #{feed_forward_block.1} parent=0 // pred_check
    %p265 = pneg %p21
  $region27: #{feed_forward_block.1} parent=0 // pred_check_branch
    %267 = sbr.rel (%p265) target = $region29
  $region28: #{feed_forward_block.1} parent=0 // pred_region
    %v268 = vld [vmem:[#allocation2] sm:$0xff]
    %v269 = vld [vmem:[#allocation2 + $0x8] sm:$0xff]
    %v270 = vld [vmem:[%s4] sm:$0x1]
    %v272 = vlaneseq
    %v273 = vshrl.u32 %v272, 7
    %v274 = vsub.s32 0, %v273
    %v275 = vrot.slane %v270, %v274
    %v277 = vadd.f32 %v268, %v275
    %v278 = vadd.f32 %v269, %v275
    %279 = vst [vmem:[%s5] sm:$0xff] %v277
    %280 = vst [vmem:[%s5 + $0x8] sm:$0xff] %v278
  $region29: #{feed_forward_block.1} parent=0 // pred_fallthru
    _
  // Predicated region
  $region30: #{feed_forward_block.1} parent=0 // pred_check
    _
  $region31: #{feed_forward_block.1} parent=0 // pred_check_branch
    %282 = sbr.rel (0) target = $region33
  $region32: #{feed_forward_block.1} parent=0 // pred_region
    _
  $region33: #{feed_forward_block.1} parent=0 // pred_fallthru
    _
  // Predicated region
  $region34: #{feed_forward_block.1} parent=0 // pred_check
    _
  $region35: #{feed_forward_block.1} parent=0 // pred_check_branch
    %284 = sbr.rel (0) target = $region37
  $region36: #{feed_forward_block.1} parent=0 // pred_region
    _
  $region37: #{feed_forward_block.1} parent=0 // pred_fallthru
    _

</llo_original>
